<compile_context>
chip_gen: v6e
topology: v6e:2x2x1
jax: 0.10.0
libtpu: 0.0.40
codegen_flags: <defaults>
</compile_context>

<pallas_src>
import numpy as np
import jax
import jax.numpy as jnp
from jax.experimental import pallas as pl
from jax.experimental.pallas import tpu as pltpu


def _linear_kernel(x_ref, w_ref, b_ref, o_ref):
    """o = x @ w + b   (w already transposed to (in, out); b is (1, out))."""
    acc = jnp.dot(x_ref[...], w_ref[...], preferred_element_type=jnp.float32)
    o_ref[...] = (acc + b_ref[...]).astype(o_ref.dtype)


def tempout_forward(x, weight, bias, *, row_tile=256):
    """Pallas-backed tempout.forward.

    x      : (..., in_channels) float32
    weight : (out_channels, in_channels) float32   (torch nn.Linear layout)
    bias   : (out_channels,) float32
    returns: (..., out_channels) float32
    """
    out_c, in_c = weight.shape
    lead = x.shape[:-1]
    m = int(np.prod(lead)) if lead else 1

    x2 = x.reshape(m, in_c)
    w_t = jnp.asarray(weight).T.astype(jnp.float32)      # (in, out) — MXU layout
    b2 = jnp.asarray(bias).reshape(1, out_c).astype(jnp.float32)

    if m <= row_tile:
        # Small problem: whole arrays live in VMEM, no grid, no pipelining.
        vmem = pl.BlockSpec(memory_space=pltpu.MemorySpace.VMEM)
        out2 = pl.pallas_call(
            _linear_kernel,
            out_shape=jax.ShapeDtypeStruct((m, out_c), jnp.float32),
            in_specs=[vmem, vmem, vmem],
            out_specs=vmem,
        )(x2, w_t, b2)
    else:
        # Large batch: tile rows; weights/bias stay un-gridded (DMA'd once).
        m_pad = ((m + row_tile - 1) // row_tile) * row_tile
        if m_pad != m:
            x2 = jnp.pad(x2, ((0, m_pad - m), (0, 0)))
        grid = (m_pad // row_tile,)
        out2 = pl.pallas_call(
            _linear_kernel,
            out_shape=jax.ShapeDtypeStruct((m_pad, out_c), jnp.float32),
            grid=grid,
            in_specs=[
                pl.BlockSpec((row_tile, in_c), lambda i: (i, 0)),
                pl.BlockSpec((in_c, out_c), lambda i: (0, 0)),
                pl.BlockSpec((1, out_c), lambda i: (0, 0)),
            ],
            out_specs=pl.BlockSpec((row_tile, out_c), lambda i: (i, 0)),
            compiler_params=pltpu.CompilerParams(
                dimension_semantics=("parallel",)),
        )(x2, w_t, b2)
        out2 = out2[:m]

    return out2.reshape(*lead, out_c)


def _reference(x, weight, bias):
    lead = x.shape[:-1]
    in_c = weight.shape[1]
    out2 = x.reshape(-1, in_c) @ weight.T + bias
    return out2.reshape(*lead, weight.shape[0])


if __name__ == "__main__":
    key = jax.random.PRNGKey(0)
    k_x, k_w, k_b, k_x2 = jax.random.split(key, 4)

    B, S = 2, 8                      # (batch, seq) leading dims
    IN_C, OUT_C = 32, 128            # out_channels multiple of 128 -> lane-dense stores

    x = jax.random.normal(k_x, (B, S, IN_C), dtype=jnp.float32)
    weight = 0.1 * jax.random.normal(k_w, (OUT_C, IN_C), dtype=jnp.float32)
    bias = 0.1 * jax.random.normal(k_b, (OUT_C,), dtype=jnp.float32)

    # Small path (no grid, whole arrays in VMEM).
    out = tempout_forward(x, weight, bias)
    out = jax.block_until_ready(out)
    ref = _reference(x, weight, bias)
    assert out.shape == (B, S, OUT_C), out.shape
    np.testing.assert_allclose(np.asarray(out), np.asarray(ref),
                               rtol=1e-5, atol=1e-5)

    # Larger-batch path (row-tiled grid, weights un-gridded, parallel axis).
    x_big = jax.random.normal(k_x2, (4, 256, IN_C), dtype=jnp.float32)
    out_big = tempout_forward(x_big, weight, bias)
    out_big = jax.block_until_ready(out_big)
    ref_big = _reference(x_big, weight, bias)
    assert out_big.shape == (4, 256, OUT_C), out_big.shape
    np.testing.assert_allclose(np.asarray(out_big), np.asarray(ref_big),
                               rtol=1e-5, atol=1e-5)

    print("KERNEL_OK")
</pallas_src>

<mosaic_0001>
module attributes {stable_mosaic.version = 11 : i64} {
  func.func @_linear_kernel(%arg0: memref<16x32xf32, #tpu.memory_space<vmem>>, %arg1: memref<32x128xf32, #tpu.memory_space<vmem>>, %arg2: memref<1x128xf32, #tpu.memory_space<vmem>>, %arg3: memref<16x128xf32, #tpu.memory_space<vmem>>) attributes {dimension_semantics = [], scalar_prefetch = 0 : i64, scratch_operands = 0 : i64, tpu.core_type = #tpu.core_type<tc>} {
    %c0 = arith.constant 0 : index
    %c0_0 = arith.constant 0 : index
    %0 = vector.load %arg0[%c0, %c0_0] : memref<16x32xf32, #tpu.memory_space<vmem>>, vector<16x32xf32>
    %c0_1 = arith.constant 0 : index
    %c0_2 = arith.constant 0 : index
    %1 = vector.load %arg1[%c0_1, %c0_2] : memref<32x128xf32, #tpu.memory_space<vmem>>, vector<32x128xf32>
    %cst = arith.constant dense<0.000000e+00> : vector<16x128xf32>
    %2 = tpu.matmul %0, %1, %cst {dimension_numbers = #tpu.dot_dimension_numbers<[1], [0], [0], [1], [0, 0, 1, 1], [], []>} : vector<16x32xf32>, vector<32x128xf32>, vector<16x128xf32> -> vector<16x128xf32>
    %c0_3 = arith.constant 0 : index
    %c0_4 = arith.constant 0 : index
    %3 = vector.load %arg2[%c0_3, %c0_4] : memref<1x128xf32, #tpu.memory_space<vmem>>, vector<1x128xf32>
    %4 = vector.broadcast %3 : vector<1x128xf32> to vector<16x128xf32>
    %5 = arith.addf %2, %4 : vector<16x128xf32>
    %c0_5 = arith.constant 0 : index
    %c0_6 = arith.constant 0 : index
    %6 = vector.load %arg3[%c0_5, %c0_6] : memref<16x128xf32, #tpu.memory_space<vmem>>, vector<16x128xf32>
    tpu.vector_store %arg3[%c0_5, %c0_6], %5 {strides = array<i32>} : memref<16x128xf32, #tpu.memory_space<vmem>>, vector<16x128xf32>,
    return
  }
}

</mosaic_0001>

<llo_original>
// kernel: tpu_custom_call.1
$region0: #{tpu_custom_call.1}
  #allocation0 [shape = 'u32[]', space=smem, size = 0x4, offset = 0x4, fixed_abs, tag = 'smem constant byte address 0x4 - core index']
  #allocation1 [shape = 'u32[144,128]{1,0:T(1,128)}', space=vmem, size = 0x12000, scoped, tag = 'internal scratch']
  %s0 = inlined_call_operand.hbm [shape: f32[16,32], index: 0, kind: input, shape index: {}]
  %s1 = inlined_call_operand.hbm [shape: f32[32,128], index: 1, kind: input, shape index: {}]
  %s2 = inlined_call_operand.vmem [shape: f32[1,128], index: 2, kind: input, shape index: {}]
  %s3 = inlined_call_operand.hbm [shape: f32[16,128], index: 3, kind: output, shape index: {}]
  %s4 = sld [smem:[#allocation0]]
  $region30: #{tpu_custom_call.1} parent=0
    _
  %s6 = ssub.s32 1, %s4
  %s7 = scalar_select 0, %s6, %s4
  $region1: #{tpu_custom_call.1} parent=0
    #allocation2 [shape = 'u8[8192]{0}', space=vmem, size = 0x2000, scoped, tag = 'input window, operand 0, single buffered']
    #allocation3 [shape = 's32[1]{0}', space=sflag, size = 0x4, scoped, tag = 'scoped memory for tpu_custom_call.1']
    #allocation4 [shape = 's32[1]{0}', space=sflag, size = 0x4, scoped, tag = 'scoped memory for tpu_custom_call.1']
    #allocation5 [shape = 'u8[16384]{0}', space=vmem, size = 0x4000, scoped, tag = 'input window, operand 1, single buffered']
    #allocation6 [shape = 's32[1]{0}', space=sflag, size = 0x4, scoped, tag = 'scoped memory for tpu_custom_call.1']
    #allocation7 [shape = 'u8[8192]{0}', space=vmem, size = 0x2000, scoped, tag = 'output window, operand 0, single buffered']
    %8 = vsyncpa [#allocation3], 0
    %9 = vsyncpa [#allocation6], 0
    %10 = vsyncpa [#allocation4], 0
    // Predicated region
    $region2: #{tpu_custom_call.1} parent=1 // pred_check
      _
    $region3: #{tpu_custom_call.1} parent=1 // pred_check_branch
      %12 = sbr.rel (0) target = $region5
    $region4: #{tpu_custom_call.1} parent=1 // pred_region
      %s14 = ssub.s32 256, 256
      %15 = vsyncadd [#allocation3], %s14
      %s16 = sshll.u32 [#allocation2], 4
      %s17 = int_to_ptr.vmem [resolvable:$true] %s16
      %22 = dma.hbm_to_vmem [thread:$0]  %s0, 256, %s17, [#allocation3], 128, 128, 8
    $region5: #{tpu_custom_call.1} parent=1 // pred_fallthru
      _
    // Predicated region
    $region6: #{tpu_custom_call.1} parent=1 // pred_check
      _
    $region7: #{tpu_custom_call.1} parent=1 // pred_check_branch
      %24 = sbr.rel (0) target = $region9
    $region8: #{tpu_custom_call.1} parent=1 // pred_region
      %s26 = ssub.s32 512, 512
      %27 = vsyncadd [#allocation6], %s26
      %s28 = sshll.u32 [#allocation5], 4
      %s29 = int_to_ptr.vmem [resolvable:$true] %s28
      %34 = dma.hbm_to_vmem [thread:$0]  %s1, 512, %s29, [#allocation6], 128, 128, 8
    $region9: #{tpu_custom_call.1} parent=1 // pred_fallthru
      _
    // Predicated region
    $region10: #{tpu_custom_call.1} parent=1 // pred_check
      _
    $region11: #{tpu_custom_call.1} parent=1 // pred_check_branch
      %36 = sbr.rel (0) target = $region13
    $region12: #{tpu_custom_call.1} parent=1 // pred_region
      _
    $region13: #{tpu_custom_call.1} parent=1 // pred_fallthru
      _
    // Predicated region
    $region14: #{tpu_custom_call.1} parent=1 // pred_check
      _
    $region15: #{tpu_custom_call.1} parent=1 // pred_check_branch
      %38 = sbr.rel (0) target = $region17
    $region16: #{tpu_custom_call.1} parent=1 // pred_region
      %39 = dma.done [#allocation3], 256
    $region17: #{tpu_custom_call.1} parent=1 // pred_fallthru
      _
    // Predicated region
    $region18: #{tpu_custom_call.1} parent=1 // pred_check
      _
    $region19: #{tpu_custom_call.1} parent=1 // pred_check_branch
      %41 = sbr.rel (0) target = $region21
    $region20: #{tpu_custom_call.1} parent=1 // pred_region
      %42 = dma.done [#allocation6], 512
    $region21: #{tpu_custom_call.1} parent=1 // pred_fallthru
      _
    %v43 = vld [vmem:[#allocation2] sm:$0xff]
    %v44 = vld [vmem:[#allocation2 + $0x8] sm:$0xff]
    %v45 = vld [vmem:[#allocation5] sm:$0xff]
    %v46 = vld [vmem:[#allocation5 + $0x8] sm:$0xff]
    %v47 = vld [vmem:[#allocation5 + $0x10] sm:$0xff]
    %v48 = vld [vmem:[#allocation5 + $0x18] sm:$0xff]
    %v49 = vld [vmem:[%s2] sm:$0x1]
    %v51 = vlaneseq
    %v52 = vshrl.u32 %v51, 7
    %v53 = vsub.s32 0, %v52
    %v54 = vrot.slane %v49, %v53
    %vm56 = vcmask 261120
    %v58 = vsel %vm56, %v43, 0
    %v61 = vsel %vm56, %v44, 0
    %63 = vmatprep.subr.mxu0 0.0
    %64 = vmatpush1.msra.mxu0 0.0
    %65 = vmatprep.subr.mxu0 0.0
    %66 = vmatpush1.msra.mxu0 0.0
    %67 = vmatprep.subr.mxu0 0.0
    %68 = vmatpush1.msra.mxu0 0.0
    %69 = vmatprep.subr.mxu0 0.0
    %70 = vmatpush1.msra.mxu0 0.0
    %71 = vmatprep.subr.mxu0 0.0
    %72 = vmatpush1.msra.mxu0 0.0
    %73 = vmatprep.subr.mxu0 0.0
    %74 = vmatpush1.msra.mxu0 0.0
    %75 = vmatprep.subr.mxu0 0.0
    %76 = vmatpush1.msra.mxu0 0.0
    %77 = vmatprep.subr.mxu0 0.0
    %78 = vmatpush1.msra.mxu0 0.0
    %79 = vmatprep.subr.mxu0 0.0
    %80 = vmatpush1.msra.mxu0 0.0
    %81 = vmatprep.subr.mxu0 0.0
    %82 = vmatpush1.msra.mxu0 0.0
    %83 = vmatprep.subr.mxu0 0.0
    %84 = vmatpush1.msra.mxu0 0.0
    %85 = vmatprep.subr.mxu0 0.0
    %86 = vmatpush1.msra.mxu0 0.0
    %87 = vmatprep.subr.mxu0 0.0
    %88 = vmatpush1.msra.mxu0 %v48
    %89 = vmatprep.subr.mxu0 0.0
    %90 = vmatpush1.msra.mxu0 %v47
    %91 = vmatprep.subr.mxu0 0.0
    %92 = vmatpush1.msra.mxu0 %v46
    %93 = vmatprep.subr.mxu0 0.0
    %94 = vmatpush1.msra.mxu0 %v45
    %95 = vmatprep.subr.mxu0 0.0
    %96 = vmatpush2.msra.mxu0 0.0
    %97 = vmatprep.subr.mxu0 0.0
    %98 = vmatpush2.msra.mxu0 0.0
    %99 = vmatprep.subr.mxu0 0.0
    %100 = vmatpush2.msra.mxu0 0.0
    %101 = vmatprep.subr.mxu0 0.0
    %102 = vmatpush2.msra.mxu0 0.0
    %103 = vmatprep.subr.mxu0 0.0
    %104 = vmatpush2.msra.mxu0 0.0
    %105 = vmatprep.subr.mxu0 0.0
    %106 = vmatpush2.msra.mxu0 0.0
    %107 = vmatprep.subr.mxu0 0.0
    %108 = vmatpush2.msra.mxu0 0.0
    %109 = vmatprep.subr.mxu0 0.0
    %110 = vmatpush2.msra.mxu0 0.0
    %111 = vmatprep.subr.mxu0 0.0
    %112 = vmatpush2.msra.mxu0 0.0
    %113 = vmatprep.subr.mxu0 0.0
    %114 = vmatpush2.msra.mxu0 0.0
    %115 = vmatprep.subr.mxu0 0.0
    %116 = vmatpush2.msra.mxu0 0.0
    %117 = vmatprep.subr.mxu0 0.0
    %118 = vmatpush2.msra.mxu0 0.0
    %119 = vmatprep.subr.mxu0 0.0
    %120 = vmatpush2.msra.mxu0 0.0
    %121 = vmatprep.subr.mxu0 0.0
    %122 = vmatpush2.msra.mxu0 0.0
    %123 = vmatprep.subr.mxu0 0.0
    %124 = vmatpush2.msra.mxu0 0.0
    %125 = vmatprep.subr.mxu0 0.0
    %126 = vmatpush2.msra.mxu0 0.0
    %127 = vmatprep.mubr.f32.mxu0 0.0
    %128 = vmatmul.mubr.f32.gmra.mxu0 %v58
    %v129 = vpop.f32.mrf.mxu0
    %v130 = vadd.f32 %v54, %v129
    %v131 = vpop.f32.mrf.mxu0
    %132 = vmatprep.mubr.f32.mxu0 0.0
    %133 = vmatmul.mubr.f32.gmra.mxu0 %v61
    %v134 = vpop.f32.mrf.mxu0
    %v135 = vadd.f32 %v54, %v134
    %v136 = vpop.f32.mrf.mxu0
    %137 = vdwg.mxu0
    %138 = vst [vmem:[#allocation7] sm:$0xff] %v130
    %139 = vst [vmem:[#allocation7 + $0x8] sm:$0xff] %v135
    // Predicated region
    $region22: #{tpu_custom_call.1} parent=1 // pred_check
      _
    $region23: #{tpu_custom_call.1} parent=1 // pred_check_branch
      %141 = sbr.rel (0) target = $region25
    $region24: #{tpu_custom_call.1} parent=1 // pred_region
      %s143 = ssub.s32 256, 256
      %144 = vsyncadd [#allocation4], %s143
      %s145 = sshll.u32 [#allocation7], 4
      %s146 = int_to_ptr.vmem [resolvable:$true] %s145
      %151 = dma.vmem_to_hbm [thread:$0]  %s146, 256, %s3, [#allocation4], 128, 128, 8
    $region25: #{tpu_custom_call.1} parent=1 // pred_fallthru
      _
    // Predicated region
    $region26: #{tpu_custom_call.1} parent=1 // pred_check
      _
    $region27: #{tpu_custom_call.1} parent=1 // pred_check_branch
      %153 = sbr.rel (0) target = $region29
    $region28: #{tpu_custom_call.1} parent=1 // pred_region
      %154 = dma.done [#allocation4], 256
    $region29: #{tpu_custom_call.1} parent=1 // pred_fallthru
      _
    %155 = vsyncpa [#allocation3], 1
    %156 = vsyncpa [#allocation6], 1
    %157 = vsyncpa [#allocation4], 1

</llo_original>
